<compile_context>
chip_gen: v7x
topology: tpu7x:2x2x1
jax: 0.10.0
libtpu: 0.0.40
codegen_flags: <defaults>
</compile_context>

<pallas_src>
import functools

import jax
import jax.numpy as jnp
from jax import lax
from jax.experimental import pallas as pl
from jax.experimental.pallas import tpu as pltpu

EPS = 1e-6  # LayerNorm eps (detectron2 ViT uses eps=1e-6)

# Raise scoped VMEM above the 16/32 MiB defaults; still within v7x's 64 MiB physical.
# Tile sizes (q_block / kv_block) must be chosen against this budget per generation.
VMEM_LIMIT_BYTES = 64 * 1024 * 1024


def _zero_mean_unit_var(x):
    # LayerNorm normalization only (gamma/beta are folded into the following matmul).
    mean = jnp.mean(x, axis=-1, keepdims=True)
    var = jnp.mean(jnp.square(x - mean), axis=-1, keepdims=True)
    return (x - mean) * lax.rsqrt(var + EPS)


# ---------------- pass 1: LN1 (folded) + fused QKV projection ----------------

def qkv_kernel(mxu_dtype, x_ref, w_ref, b_ref, q_ref, k_ref, v_ref):
    """One (Tq, C) row block: x -> x_hat -> x_hat @ W_qkv_folded + b_folded -> q/k/v.

    LN1 gamma/beta and the attention scale are folded into W/b on the host, so this
    is a single lane-dense (Tq, C) @ (C, 3C) MXU matmul per row block.
    """
    C = q_ref.shape[-1]
    x = x_ref[0].astype(jnp.float32)                               # (Tq, C)
    xh = _zero_mean_unit_var(x).astype(mxu_dtype)
    qkv = jnp.dot(xh, w_ref[...], preferred_element_type=jnp.float32) + b_ref[...]
    q_ref[0] = qkv[:, 0 * C:1 * C].astype(q_ref.dtype)             # scale already folded
    k_ref[0] = qkv[:, 1 * C:2 * C].astype(k_ref.dtype)
    v_ref[0] = qkv[:, 2 * C:3 * C].astype(v_ref.dtype)


# ---- pass 2: flash attention + proj + residual + LN2 (folded) + MLP + residual ----

def attn_mlp_kernel(num_heads, head_dim, mxu_dtype,
                    x_ref, q_ref, k_ref, v_ref,
                    wp_ref, bp_ref, w1_ref, fb1_ref, w2_ref, fb2_ref,
                    o_ref,
                    m_ref, l_ref, acc_ref):
    """Grid = (B, q-row blocks, kv blocks).

    Online-softmax attention accumulated across the (innermost, "arbitrary") kv axis;
    at the last kv block: merge heads + output projection + residual + LN2(folded) +
    MLP + residual, all on the resident (Tq, C) row block.
    """
    kv = pl.program_id(2)
    last_kv = pl.num_programs(2) - 1

    @pl.when(kv == 0)
    def _():
        m_ref[...] = jnp.full(m_ref.shape, -jnp.inf, jnp.float32)
        l_ref[...] = jnp.zeros(l_ref.shape, jnp.float32)
        acc_ref[...] = jnp.zeros(acc_ref.shape, jnp.float32)

    q = q_ref[0]                                                   # (Tq, C), mxu_dtype
    k = k_ref[0]                                                   # (Tk, C)
    v = v_ref[0]                                                   # (Tk, C)
    contract_last = (((1,), (1,)), ((), ()))                       # a @ b.T w/o transpose

    # Short static head loop; per-head softmax state lives in VMEM scratch refs so
    # vreg live ranges stay bounded (nH is 12 for real ViT-det).
    for h in range(num_heads):
        sl = slice(h * head_dim, (h + 1) * head_dim)
        s = lax.dot_general(q[:, sl], k[:, sl], contract_last,
                            preferred_element_type=jnp.float32)    # (Tq, Tk)
        m_prev = m_ref[h]                                          # (Tq, 1)
        m_new = jnp.maximum(m_prev, jnp.max(s, axis=-1, keepdims=True))
        alpha = jnp.exp(m_prev - m_new)
        p = jnp.exp(s - m_new)
        l_ref[h] = alpha * l_ref[h] + jnp.sum(p, axis=-1, keepdims=True)
        acc_ref[h] = alpha * acc_ref[h] + jnp.dot(
            p.astype(mxu_dtype), v[:, sl], preferred_element_type=jnp.float32)
        m_ref[h] = m_new

    @pl.when(kv == last_kv)
    def _():
        # Head merge + output projection: concat_h(o_h) @ Wproj == sum_h o_h @ Wproj_h.
        y = bp_ref[...].astype(jnp.float32)                        # (1, C) broadcasts
        for h in range(num_heads):
            o_h = acc_ref[h] * pl.reciprocal(l_ref[h], approx=True)   # (Tq, hd)
            y = y + jnp.dot(o_h.astype(mxu_dtype), wp_ref[h],
                            preferred_element_type=jnp.float32)       # (Tq, C)
        x1 = x_ref[0].astype(jnp.float32) + y                      # first residual

        # LN2 (gamma/beta folded into fc1) + MLP on the same (Tq, C) row block.
        xh2 = _zero_mean_unit_var(x1).astype(mxu_dtype)
        hid = jnp.dot(xh2, w1_ref[...], preferred_element_type=jnp.float32) + fb1_ref[...]
        hid = jax.nn.gelu(hid, approximate=False)                  # exact erf GELU
        mlp = jnp.dot(hid.astype(mxu_dtype), w2_ref[...],
                      preferred_element_type=jnp.float32) + fb2_ref[...]
        o_ref[0] = (x1 + mlp).astype(o_ref.dtype)                  # second residual


# ---------------- wrapper ----------------

def vit_block_forward(x, params, num_heads, *, mxu_dtype=jnp.bfloat16,
                      q_block=None, kv_block=None):
    """Forward pass of the ViT Block.  x: (B, H, W, C) channels-last."""
    B, H, W, C = x.shape
    N = H * W
    hd = C // num_heads
    scale = hd ** -0.5
    F_dim = params["w_fc1"].shape[1]
    f32 = jnp.float32

    # Tile sizes: multiples of 8 that divide N.  Recommended: 256-512 on v6e/v7x,
    # 128-256 on v5e (smaller scoped-VMEM budget, 128-wide MXU).
    if q_block is None:
        q_block = N if N <= 512 else 512
    if kv_block is None:
        kv_block = N if N <= 512 else 512
    assert N % q_block == 0 and N % kv_block == 0, "q/kv block must divide H*W"
    nQ, nKV = N // q_block, N // kv_block

    xs = x.reshape(B, N, C)

    # ---- host-side parameter prep (one-time, tiny) ----
    # Fold LN1 gamma/beta and the attention scale into the fused QKV weights/bias:
    #   ln1(x) @ Wqkv + bqkv == x_hat @ (diag(g1) Wqkv) + (b1 @ Wqkv + bqkv)
    g1 = params["ln1_g"].reshape(C).astype(f32)
    b1 = params["ln1_b"].reshape(1, C).astype(f32)
    w_qkv = params["w_qkv"].astype(f32)                            # (C, 3C), y = x@W + b
    b_qkv = params["b_qkv"].reshape(1, 3 * C).astype(f32)
    w_qkv_f = w_qkv * g1[:, None]
    b_qkv_f = b1 @ w_qkv + b_qkv
    col_scale = jnp.concatenate([jnp.full((C,), scale, f32), jnp.ones((2 * C,), f32)])
    w_qkv_f = (w_qkv_f * col_scale[None, :]).astype(mxu_dtype)
    b_qkv_f = b_qkv_f * col_scale[None, :]                         # bias stays f32

    # Head-major output projection rows: concat-of-heads @ Wproj == sum_h o_h @ Wproj_h
    wp = params["w_proj"].reshape(num_heads, hd, C).astype(mxu_dtype)
    bp = params["b_proj"].reshape(1, C).astype(f32)

    # Fold LN2 gamma/beta into fc1.
    g2 = params["ln2_g"].reshape(C).astype(f32)
    b2 = params["ln2_b"].reshape(1, C).astype(f32)
    w1 = params["w_fc1"].astype(f32)
    w1_f = (w1 * g2[:, None]).astype(mxu_dtype)
    fb1 = b2 @ w1 + params["b_fc1"].reshape(1, F_dim).astype(f32)
    w2 = params["w_fc2"].astype(mxu_dtype)
    fb2 = params["b_fc2"].reshape(1, C).astype(f32)

    isz = jnp.dtype(mxu_dtype).itemsize
    xsz = x.dtype.itemsize

    # ---- pass 1: LN1 + fused QKV projection, grid (B, q-row blocks) ----
    qkv_cost = pl.CostEstimate(
        flops=2 * B * N * C * 3 * C,
        transcendentals=0,
        bytes_accessed=B * N * C * xsz + 3 * B * N * C * isz + 3 * C * C * isz + 3 * C * 4)
    q, k, v = pl.pallas_call(
        functools.partial(qkv_kernel, mxu_dtype),
        out_shape=tuple(jax.ShapeDtypeStruct((B, N, C), mxu_dtype) for _ in range(3)),
        grid=(B, nQ),
        in_specs=[
            pl.BlockSpec((1, q_block, C), lambda b, i: (b, i, 0)),     # x rows
            pl.BlockSpec((C, 3 * C), lambda b, i: (0, 0)),             # W_qkv (LN1+scale folded)
            pl.BlockSpec((1, 3 * C), lambda b, i: (0, 0)),             # b_qkv (folded)
        ],
        out_specs=tuple(pl.BlockSpec((1, q_block, C), lambda b, i: (b, i, 0))
                        for _ in range(3)),
        compiler_params=pltpu.CompilerParams(
            dimension_semantics=("parallel", "parallel"),
            vmem_limit_bytes=VMEM_LIMIT_BYTES),
        cost_estimate=qkv_cost,
    )(xs, w_qkv_f, b_qkv_f)

    # ---- pass 2: flash attention + proj + residual + LN2 + MLP + residual ----
    attn_flops = 4 * B * num_heads * N * N * hd                     # QK^T + PV
    proj_flops = 2 * B * N * C * C
    mlp_flops = 4 * B * N * C * F_dim
    attn_cost = pl.CostEstimate(
        flops=attn_flops + proj_flops + mlp_flops,
        transcendentals=B * num_heads * N * N + B * N * F_dim,      # exp + erf
        bytes_accessed=(2 * B * N * C * xsz                          # x in, out
                        + B * N * C * isz                            # q
                        + 2 * nQ * B * N * C * isz                   # k, v restreamed per q block
                        + (num_heads * hd * C + 2 * C * F_dim) * isz))
    cmap2 = lambda b, i, j: (0, 0)        # constant 2-D weight blocks
    cmap3 = lambda b, i, j: (0, 0, 0)     # constant 3-D weight blocks
    out = pl.pallas_call(
        functools.partial(attn_mlp_kernel, num_heads, hd, mxu_dtype),
        out_shape=jax.ShapeDtypeStruct((B, N, C), x.dtype),
        grid=(B, nQ, nKV),
        in_specs=[
            pl.BlockSpec((1, q_block, C), lambda b, i, j: (b, i, 0)),   # x (residual)
            pl.BlockSpec((1, q_block, C), lambda b, i, j: (b, i, 0)),   # q rows
            pl.BlockSpec((1, kv_block, C), lambda b, i, j: (b, j, 0)),  # k block
            pl.BlockSpec((1, kv_block, C), lambda b, i, j: (b, j, 0)),  # v block
            pl.BlockSpec((num_heads, hd, C), cmap3),                    # W_proj (head-major)
            pl.BlockSpec((1, C), cmap2),                                # b_proj
            pl.BlockSpec((C, F_dim), cmap2),                            # W_fc1 (LN2 folded)
            pl.BlockSpec((1, F_dim), cmap2),                            # b_fc1 (LN2 folded)
            pl.BlockSpec((F_dim, C), cmap2),                            # W_fc2
            pl.BlockSpec((1, C), cmap2),                                # b_fc2
        ],
        out_specs=pl.BlockSpec((1, q_block, C), lambda b, i, j: (b, i, 0)),
        scratch_shapes=[
            pltpu.VMEM((num_heads, q_block, 1), jnp.float32),           # running max
            pltpu.VMEM((num_heads, q_block, 1), jnp.float32),           # running denom
            pltpu.VMEM((num_heads, q_block, hd), jnp.float32),          # running numerator
        ],
        compiler_params=pltpu.CompilerParams(
            dimension_semantics=("parallel", "parallel", "arbitrary"),
            vmem_limit_bytes=VMEM_LIMIT_BYTES),
        cost_estimate=attn_cost,
    )(xs, q, k, v, wp, bp, w1_f, fb1, w2, fb2)

    return out.reshape(B, H, W, C)


# ---------------- pure-JAX reference (for validation) ----------------

def ref_forward(x, params, num_heads):
    B, H, W, C = x.shape
    N = H * W
    hd = C // num_heads
    scale = hd ** -0.5

    def ln(t, g, b):
        m = t.mean(-1, keepdims=True)
        v = jnp.square(t - m).mean(-1, keepdims=True)
        return (t - m) / jnp.sqrt(v + EPS) * g + b

    xs = x.reshape(B, N, C)
    h1 = ln(xs, params["ln1_g"][0], params["ln1_b"][0])
    qkv = h1 @ params["w_qkv"] + params["b_qkv"][0]
    qkv = qkv.reshape(B, N, 3, num_heads, hd).transpose(2, 0, 3, 1, 4)
    qkv = qkv.reshape(3, B * num_heads, N, hd)
    q, k, v = qkv[0], qkv[1], qkv[2]
    attn = (q * scale) @ jnp.swapaxes(k, -2, -1)
    attn = jax.nn.softmax(attn, axis=-1)
    o = (attn @ v).reshape(B, num_heads, H, W, hd).transpose(0, 2, 3, 1, 4).reshape(B, N, C)
    x1 = xs + o @ params["w_proj"] + params["b_proj"][0]
    h2 = ln(x1, params["ln2_g"][0], params["ln2_b"][0])
    m = jax.nn.gelu(h2 @ params["w_fc1"] + params["b_fc1"][0], approximate=False)
    m = m @ params["w_fc2"] + params["b_fc2"][0]
    return (x1 + m).reshape(B, H, W, C)


if __name__ == "__main__":
    # Small but lane-aligned shapes: C=128 (1 full lane group), hd=32, N=64.
    B, H, W, C = 2, 8, 8, 128      # embed_dim=128
    num_heads = 4                  # head_dim=32
    F = 256                        # feedforward_channels

    key = jax.random.PRNGKey(0)
    keys = jax.random.split(key, 16)

    # Deterministic synthetic parameters (Linear weights stored transposed: y = x@W + b).
    # Non-trivial LN gamma/beta so the host-side folding is actually exercised.
    params = {
        "ln1_g": 1.0 + 0.1 * jax.random.normal(keys[0], (1, C), jnp.float32),
        "ln1_b": 0.05 * jax.random.normal(keys[1], (1, C), jnp.float32),
        "w_qkv": 0.02 * jax.random.normal(keys[2], (C, 3 * C), jnp.float32),
        "b_qkv": 0.02 * jax.random.normal(keys[3], (1, 3 * C), jnp.float32),
        "w_proj": 0.02 * jax.random.normal(keys[4], (C, C), jnp.float32),
        "b_proj": 0.02 * jax.random.normal(keys[5], (1, C), jnp.float32),
        "ln2_g": 1.0 + 0.1 * jax.random.normal(keys[6], (1, C), jnp.float32),
        "ln2_b": 0.05 * jax.random.normal(keys[7], (1, C), jnp.float32),
        "w_fc1": 0.02 * jax.random.normal(keys[8], (C, F), jnp.float32),
        "b_fc1": 0.02 * jax.random.normal(keys[9], (1, F), jnp.float32),
        "w_fc2": 0.02 * jax.random.normal(keys[10], (F, C), jnp.float32),
        "b_fc2": 0.02 * jax.random.normal(keys[11], (1, C), jnp.float32),
    }
    x = jax.random.normal(keys[12], (B, H, W, C), jnp.float32)

    ref = ref_forward(x, params, num_heads)

    # f32 MXU-operand path: tight parity with the fp32 PyTorch reference.
    # q_block=kv_block=32 -> 2x2 row/kv blocks, exercising the online-softmax tiling.
    out_f32 = vit_block_forward(x, params, num_heads, mxu_dtype=jnp.float32,
                                q_block=32, kv_block=32)
    jax.block_until_ready(out_f32)
    assert out_f32.shape == (B, H, W, C)
    assert jnp.allclose(out_f32, ref, atol=1e-3, rtol=1e-3), "f32 path mismatch vs reference"

    # Default bf16 MXU-operand path (f32 accumulation) — validated at looser tolerance.
    out_bf16 = vit_block_forward(x, params, num_heads, q_block=32, kv_block=32)
    jax.block_until_ready(out_bf16)
    assert jnp.allclose(out_bf16, ref, atol=2e-2, rtol=2e-2), "bf16 path mismatch vs reference"

    print("KERNEL_OK")
</pallas_src>

<mosaic_0001>
module attributes {stable_mosaic.version = 11 : i64} {
  func.func @qkv_kernel(%arg0: i32, %arg1: i32, %arg2: memref<1x32x128xf32, #tpu.memory_space<vmem>>, %arg3: memref<128x384xf32, #tpu.memory_space<vmem>>, %arg4: memref<1x384xf32, #tpu.memory_space<vmem>>, %arg5: memref<1x32x128xf32, #tpu.memory_space<vmem>>, %arg6: memref<1x32x128xf32, #tpu.memory_space<vmem>>, %arg7: memref<1x32x128xf32, #tpu.memory_space<vmem>>) attributes {dimension_semantics = [#tpu.dimension_semantics<parallel>, #tpu.dimension_semantics<parallel>], iteration_bounds = array<i64: 2, 2>, scalar_prefetch = 0 : i64, scratch_operands = 0 : i64, tpu.core_type = #tpu.core_type<tc>, window_params = [{transform_indices = @transform_0, window_bounds = array<i64: 1, 32, 128>}, {pipeline_mode = #tpu.pipeline_mode<synchronous>, transform_indices = @transform_1, window_bounds = array<i64: 128, 384>}, {pipeline_mode = #tpu.pipeline_mode<synchronous>, transform_indices = @transform_2, window_bounds = array<i64: 1, 384>}, {transform_indices = @transform_3, window_bounds = array<i64: 1, 32, 128>}, {transform_indices = @transform_4, window_bounds = array<i64: 1, 32, 128>}, {transform_indices = @transform_5, window_bounds = array<i64: 1, 32, 128>}]} {
    %c0 = arith.constant 0 : index
    %c0_0 = arith.constant 0 : index
    %c0_1 = arith.constant 0 : index
    %0 = vector.load %arg2[%c0, %c0_0, %c0_1] : memref<1x32x128xf32, #tpu.memory_space<vmem>>, vector<1x32x128xf32>
    %1 = vector.shape_cast %0 : vector<1x32x128xf32> to vector<32x128xf32>
    %cst = arith.constant dense<0.000000e+00> : vector<32xf32>
    %2 = vector.multi_reduction <add>, %1, %cst [1] : vector<32x128xf32> to vector<32xf32>
    %3 = vector.shape_cast %2 : vector<32xf32> to vector<32x1xf32>
    %cst_2 = arith.constant 1.280000e+02 : f32
    %4 = vector.broadcast %cst_2 : f32 to vector<32x1xf32>
    %5 = arith.divf %3, %4 : vector<32x1xf32>
    %6 = vector.broadcast %5 : vector<32x1xf32> to vector<32x128xf32>
    %7 = arith.subf %1, %6 : vector<32x128xf32>
    %8 = arith.mulf %7, %7 : vector<32x128xf32>
    %cst_3 = arith.constant dense<0.000000e+00> : vector<32xf32>
    %9 = vector.multi_reduction <add>, %8, %cst_3 [1] : vector<32x128xf32> to vector<32xf32>
    %10 = vector.shape_cast %9 : vector<32xf32> to vector<32x1xf32>
    %cst_4 = arith.constant 1.280000e+02 : f32
    %11 = vector.broadcast %cst_4 : f32 to vector<32x1xf32>
    %12 = arith.divf %10, %11 : vector<32x1xf32>
    %13 = vector.broadcast %5 : vector<32x1xf32> to vector<32x128xf32>
    %14 = arith.subf %1, %13 : vector<32x128xf32>
    %cst_5 = arith.constant 9.99999997E-7 : f32
    %15 = vector.broadcast %cst_5 : f32 to vector<32x1xf32>
    %16 = arith.addf %12, %15 : vector<32x1xf32>
    %17 = math.rsqrt %16 : vector<32x1xf32>
    %18 = vector.broadcast %17 : vector<32x1xf32> to vector<32x128xf32>
    %19 = arith.mulf %14, %18 : vector<32x128xf32>
    %c0_6 = arith.constant 0 : index
    %c0_7 = arith.constant 0 : index
    %20 = vector.load %arg3[%c0_6, %c0_7] : memref<128x384xf32, #tpu.memory_space<vmem>>, vector<128x384xf32>
    %cst_8 = arith.constant dense<0.000000e+00> : vector<32x384xf32>
    %21 = tpu.matmul %19, %20, %cst_8 {dimension_numbers = #tpu.dot_dimension_numbers<[1], [0], [0], [1], [0, 0, 1, 1], [], []>} : vector<32x128xf32>, vector<128x384xf32>, vector<32x384xf32> -> vector<32x384xf32>
    %c0_9 = arith.constant 0 : index
    %c0_10 = arith.constant 0 : index
    %22 = vector.load %arg4[%c0_9, %c0_10] : memref<1x384xf32, #tpu.memory_space<vmem>>, vector<1x384xf32>
    %23 = vector.broadcast %22 : vector<1x384xf32> to vector<32x384xf32>
    %24 = arith.addf %21, %23 : vector<32x384xf32>
    %25 = vector.extract_strided_slice %24 {offsets = [0, 0], sizes = [32, 128], strides = [1, 1]} : vector<32x384xf32> to vector<32x128xf32>
    %c0_11 = arith.constant 0 : index
    %c0_12 = arith.constant 0 : index
    %c0_13 = arith.constant 0 : index
    %26 = vector.load %arg5[%c0_11, %c0_12, %c0_13] : memref<1x32x128xf32, #tpu.memory_space<vmem>>, vector<1x32x128xf32>
    %27 = vector.shape_cast %26 : vector<1x32x128xf32> to vector<32x128xf32>
    %28 = vector.shape_cast %25 : vector<32x128xf32> to vector<1x32x128xf32>
    tpu.vector_store %arg5[%c0_11, %c0_12, %c0_13], %28 {strides = array<i32>} : memref<1x32x128xf32, #tpu.memory_space<vmem>>, vector<1x32x128xf32>,
    %29 = vector.extract_strided_slice %24 {offsets = [0, 128], sizes = [32, 128], strides = [1, 1]} : vector<32x384xf32> to vector<32x128xf32>
    %c0_14 = arith.constant 0 : index
    %c0_15 = arith.constant 0 : index
    %c0_16 = arith.constant 0 : index
    %30 = vector.load %arg6[%c0_14, %c0_15, %c0_16] : memref<1x32x128xf32, #tpu.memory_space<vmem>>, vector<1x32x128xf32>
    %31 = vector.shape_cast %30 : vector<1x32x128xf32> to vector<32x128xf32>
    %32 = vector.shape_cast %29 : vector<32x128xf32> to vector<1x32x128xf32>
    tpu.vector_store %arg6[%c0_14, %c0_15, %c0_16], %32 {strides = array<i32>} : memref<1x32x128xf32, #tpu.memory_space<vmem>>, vector<1x32x128xf32>,
    %33 = vector.extract_strided_slice %24 {offsets = [0, 256], sizes = [32, 128], strides = [1, 1]} : vector<32x384xf32> to vector<32x128xf32>
    %c0_17 = arith.constant 0 : index
    %c0_18 = arith.constant 0 : index
    %c0_19 = arith.constant 0 : index
    %34 = vector.load %arg7[%c0_17, %c0_18, %c0_19] : memref<1x32x128xf32, #tpu.memory_space<vmem>>, vector<1x32x128xf32>
    %35 = vector.shape_cast %34 : vector<1x32x128xf32> to vector<32x128xf32>
    %36 = vector.shape_cast %33 : vector<32x128xf32> to vector<1x32x128xf32>
    tpu.vector_store %arg7[%c0_17, %c0_18, %c0_19], %36 {strides = array<i32>} : memref<1x32x128xf32, #tpu.memory_space<vmem>>, vector<1x32x128xf32>,
    return
  }
  func.func @transform_0(%arg0: i32, %arg1: i32) -> (i32, i32, i32) {
    %c0_i32 = arith.constant 0 : i32
    %c0_i32_0 = arith.constant 0 : i32
    return %arg0, %arg1, %c0_i32 : i32, i32, i32
  }
  func.func @transform_1(%arg0: i32, %arg1: i32) -> (i32, i32) {
    %c0_i32 = arith.constant 0 : i32
    %c0_i32_0 = arith.constant 0 : i32
    %c0_i32_1 = arith.constant 0 : i32
    return %c0_i32, %c0_i32_0 : i32, i32
  }
  func.func @transform_2(%arg0: i32, %arg1: i32) -> (i32, i32) {
    %c0_i32 = arith.constant 0 : i32
    %c0_i32_0 = arith.constant 0 : i32
    %c0_i32_1 = arith.constant 0 : i32
    return %c0_i32, %c0_i32_0 : i32, i32
  }
  func.func @transform_3(%arg0: i32, %arg1: i32) -> (i32, i32, i32) {
    %c0_i32 = arith.constant 0 : i32
    %c0_i32_0 = arith.constant 0 : i32
    return %arg0, %arg1, %c0_i32 : i32, i32, i32
  }
  func.func @transform_4(%arg0: i32, %arg1: i32) -> (i32, i32, i32) {
    %c0_i32 = arith.constant 0 : i32
    %c0_i32_0 = arith.constant 0 : i32
    return %arg0, %arg1, %c0_i32 : i32, i32, i32
  }
  func.func @transform_5(%arg0: i32, %arg1: i32) -> (i32, i32, i32) {
    %c0_i32 = arith.constant 0 : i32
    %c0_i32_0 = arith.constant 0 : i32
    return %arg0, %arg1, %c0_i32 : i32, i32, i32
  }
}

</mosaic_0001>

<llo_original>
// kernel: tpu_custom_call.1
$region0: #{tpu_custom_call.1}
  #allocation0 [shape = 'u32[]', space=smem, size = 0x4, offset = 0x4, fixed_abs, tag = 'smem constant byte address 0x4 - core index']
  #allocation1 [shape = 'u32[144,128]{1,0:T(1,128)}', space=vmem, size = 0x12000, scoped, tag = 'internal scratch']
  %s0 = inlined_call_operand.hbm [shape: f32[2,64,128], index: 0, kind: input, shape index: {}]
  %s1 = inlined_call_operand.hbm [shape: f32[128,384], index: 1, kind: input, shape index: {}]
  %s2 = inlined_call_operand.hbm [shape: f32[1,384], index: 2, kind: input, shape index: {}]
  %s3 = inlined_call_operand.hbm [shape: f32[2,64,128], index: 3, kind: output, shape index: {0}]
  %s4 = inlined_call_operand.hbm [shape: f32[2,64,128], index: 4, kind: output, shape index: {1}]
  %s5 = inlined_call_operand.hbm [shape: f32[2,64,128], index: 5, kind: output, shape index: {2}]
  %6 = xla_tuple %s3, %s4, %s5
  %s7 = sld [smem:[#allocation0]]
  $region73: #{tpu_custom_call.1} parent=0
    _
  %s9 = ssub.s32 1, %s7
  %s10 = scalar_select 0, %s9, %s7
  $region1: #{tpu_custom_call.1} parent=0
    #allocation2 [shape = 'u8[32768]{0}', space=vmem, size = 0x8000, scoped, tag = 'input window, operand 0']
    #allocation3 [shape = 's32[2]{0}', space=sflag, size = 0x8, scoped, tag = 'scoped memory for tpu_custom_call.1']
    #allocation4 [shape = 's32[2]{0}', space=sflag, size = 0x8, scoped, tag = 'scoped memory for tpu_custom_call.1']
    #allocation5 [shape = 'u8[196608]{0}', space=vmem, size = 0x30000, scoped, tag = 'input window, operand 1, single buffered']
    #allocation6 [shape = 's32[1]{0}', space=sflag, size = 0x4, scoped, tag = 'scoped memory for tpu_custom_call.1']
    #allocation7 [shape = 'u8[1536]{0}', space=vmem, size = 0x800, scoped, tag = 'input window, operand 2, single buffered']
    #allocation8 [shape = 'u8[32768]{0}', space=vmem, size = 0x8000, scoped, tag = 'output window, operand 0']
    #allocation9 [shape = 'u8[32768]{0}', space=vmem, size = 0x8000, scoped, tag = 'output window, operand 1']
    #allocation10 [shape = 's32[2]{0}', space=sflag, size = 0x8, scoped, tag = 'scoped memory for tpu_custom_call.1']
    #allocation11 [shape = 'u8[32768]{0}', space=vmem, size = 0x8000, scoped, tag = 'output window, operand 2']
    %11 = vsyncpa [#allocation3], 0
    %s12 = scalar_lea.sflag [#allocation3], 1
    %13 = vsyncpa %s12, 0
    %14 = vsyncpa [#allocation6], 0
    %15 = vsyncpa [#allocation4], 0
    %s16 = scalar_lea.sflag [#allocation4], 1
    %17 = vsyncpa %s16, 0
    %18 = vsyncpa [#allocation10], 0
    %s19 = scalar_lea.sflag [#allocation10], 1
    %20 = vsyncpa %s19, 0
    loop: start=0, step=1, limit=6
    $region2: #{tpu_custom_call.1} parent=1 // loop_pre_header
      _
    $region3: #{tpu_custom_call.1} parent=1 // loop_header
      %s22 = sphi 0, %s26
      %p23 = scmp.ge.s32.totalorder %s22, 6
      %s29 = sphi 0, %s41
      %s30 = sphi 0, %s37
      %s31 = sphi 0, %s29
      %s32 = sphi 0, %s30
      %s33 = sphi 0, %s31
      %s34 = sphi 0, %s32
      %s46 = sphi 0, %s48
      %s49 = sphi 0, %s46
      %s50 = sphi 0, %s49
      %s66 = sphi 0, %s50
      %s70 = sphi 0, %s70
      %s72 = sphi 0, %s70
      %s73 = sphi 0, %s72
      %s87 = sphi 0, %s73
      %s91 = sphi 0, %s91
      %s93 = sphi 0, %s91
      %s94 = sphi 0, %s93
      %s108 = sphi 0, %s94
      %s116 = sphi 0, %s118
      %s119 = sphi 0, %s116
      %s120 = sphi 0, %s119
      %s136 = sphi 0, %s120
      %s144 = sphi 0, %s146
      %s147 = sphi 0, %s144
      %s148 = sphi 0, %s147
      %s164 = sphi 0, %s148
      %s172 = sphi 0, %s174
      %s175 = sphi 0, %s172
      %s176 = sphi 0, %s175
      %s192 = sphi 0, %s176
    $region4: #{tpu_custom_call.1} parent=1 // loop_header_branch
      %25 = sbr.rel (%p23) target = $region8
    $region5: #{tpu_custom_call.1} parent=1 // loop_body
      %s27 = ssub.s32 %s22, 1
      %s28 = ssub.s32 %s22, 2
      %s35 = sadd.s32 1, %s30
      %p36 = scmp.ge.s32.totalorder %s35, 2
      %s37 = scalar_select %p36, 0, %s35
      %s38 = sadd.s32 1, %s29
      %s39 = scalar_select %p36, %s38, %s29
      %p40 = scmp.ge.s32.totalorder %s39, 2
      %s41 = scalar_select %p40, 0, %s39
      %s42 = ssub.s32 %s29, %s41
      %s43 = ssub.s32 %s30, %s37
      %s44 = sor.u32 %s42, %s43
      %p45 = scmp.eq.s32.totalorder %s44, 0
      %s47 = sadd.s32 %s46, 1
      %s48 = scalar_select %p45, %s46, %s47
      %p51 = pneg %p45
      %p52 = scmp.eq.s32.totalorder %s22, 3
      %p53 = por %p51, %p52
      %p54 = scmp.ne.s32.totalorder %s46, %s49
      %p55 = scmp.eq.s32.totalorder %s22, 0
      %p56 = por %p54, %p55
      %p57 = scmp.ne.s32.totalorder %s46, %s49
      %p58 = scmp.eq.s32.totalorder %s27, 3
      %p59 = por %p57, %p58
      %p60 = scmp.ne.s32.totalorder %s49, %s50
      %p61 = scmp.eq.s32.totalorder %s27, 0
      %p62 = por %p60, %p61
      %p63 = scmp.ne.s32.totalorder %s49, %s50
      %p64 = scmp.eq.s32.totalorder %s28, 3
      %p65 = por %p63, %p64
      %p67 = scmp.ne.s32.totalorder %s50, %s66
      %p68 = scmp.eq.s32.totalorder %s28, 0
      %p69 = por %p67, %p68
      %s71 = sadd.s32 %s70, 1
      %p74 = scmp.eq.s32.totalorder %s22, 3
      %p75 = scmp.ne.s32.totalorder %s70, %s72
      %p76 = scmp.eq.s32.totalorder %s22, 0
      %p77 = por %p75, %p76
      %p78 = scmp.ne.s32.totalorder %s70, %s72
      %p79 = scmp.eq.s32.totalorder %s27, 3
      %p80 = por %p78, %p79
      %p81 = scmp.ne.s32.totalorder %s72, %s73
      %p82 = scmp.eq.s32.totalorder %s27, 0
      %p83 = por %p81, %p82
      %p84 = scmp.ne.s32.totalorder %s72, %s73
      %p85 = scmp.eq.s32.totalorder %s28, 3
      %p86 = por %p84, %p85
      %p88 = scmp.ne.s32.totalorder %s73, %s87
      %p89 = scmp.eq.s32.totalorder %s28, 0
      %p90 = por %p88, %p89
      %s92 = sadd.s32 %s91, 1
      %p95 = scmp.eq.s32.totalorder %s22, 3
      %p96 = scmp.ne.s32.totalorder %s91, %s93
      %p97 = scmp.eq.s32.totalorder %s22, 0
      %p98 = por %p96, %p97
      %p99 = scmp.ne.s32.totalorder %s91, %s93
      %p100 = scmp.eq.s32.totalorder %s27, 3
      %p101 = por %p99, %p100
      %p102 = scmp.ne.s32.totalorder %s93, %s94
      %p103 = scmp.eq.s32.totalorder %s27, 0
      %p104 = por %p102, %p103
      %p105 = scmp.ne.s32.totalorder %s93, %s94
      %p106 = scmp.eq.s32.totalorder %s28, 3
      %p107 = por %p105, %p106
      %p109 = scmp.ne.s32.totalorder %s94, %s108
      %p110 = scmp.eq.s32.totalorder %s28, 0
      %p111 = por %p109, %p110
      %s112 = ssub.s32 %s29, %s41
      %s113 = ssub.s32 %s30, %s37
      %s114 = sor.u32 %s112, %s113
      %p115 = scmp.eq.s32.totalorder %s114, 0
      %s117 = sadd.s32 %s116, 1
      %s118 = scalar_select %p115, %s116, %s117
      %p121 = pneg %p115
      %p122 = scmp.eq.s32.totalorder %s22, 3
      %p123 = por %p121, %p122
      %p124 = scmp.ne.s32.totalorder %s116, %s119
      %p125 = scmp.eq.s32.totalorder %s22, 0
      %p126 = por %p124, %p125
      %p127 = scmp.ne.s32.totalorder %s116, %s119
      %p128 = scmp.eq.s32.totalorder %s27, 3
      %p129 = por %p127, %p128
      %p130 = scmp.ne.s32.totalorder %s119, %s120
      %p131 = scmp.eq.s32.totalorder %s27, 0
      %p132 = por %p130, %p131
      %p133 = scmp.ne.s32.totalorder %s119, %s120
      %p134 = scmp.eq.s32.totalorder %s28, 3
      %p135 = por %p133, %p134
      %p137 = scmp.ne.s32.totalorder %s120, %s136
      %p138 = scmp.eq.s32.totalorder %s28, 0
      %p139 = por %p137, %p138
      %s140 = ssub.s32 %s29, %s41
      %s141 = ssub.s32 %s30, %s37
      %s142 = sor.u32 %s140, %s141
      %p143 = scmp.eq.s32.totalorder %s142, 0
      %s145 = sadd.s32 %s144, 1
      %s146 = scalar_select %p143, %s144, %s145
      %p149 = pneg %p143
      %p150 = scmp.eq.s32.totalorder %s22, 3
      %p151 = por %p149, %p150
      %p152 = scmp.ne.s32.totalorder %s144, %s147
      %p153 = scmp.eq.s32.totalorder %s22, 0
      %p154 = por %p152, %p153
      %p155 = scmp.ne.s32.totalorder %s144, %s147
      %p156 = scmp.eq.s32.totalorder %s27, 3
      %p157 = por %p155, %p156
      %p158 = scmp.ne.s32.totalorder %s147, %s148
      %p159 = scmp.eq.s32.totalorder %s27, 0
      %p160 = por %p158, %p159
      %p161 = scmp.ne.s32.totalorder %s147, %s148
      %p162 = scmp.eq.s32.totalorder %s28, 3
      %p163 = por %p161, %p162
      %p165 = scmp.ne.s32.totalorder %s148, %s164
      %p166 = scmp.eq.s32.totalorder %s28, 0
      %p167 = por %p165, %p166
      %s168 = ssub.s32 %s29, %s41
      %s169 = ssub.s32 %s30, %s37
      %s170 = sor.u32 %s168, %s169
      %p171 = scmp.eq.s32.totalorder %s170, 0
      %s173 = sadd.s32 %s172, 1
      %s174 = scalar_select %p171, %s172, %s173
      %p177 = pneg %p171
      %p178 = scmp.eq.s32.totalorder %s22, 3
      %p179 = por %p177, %p178
      %p180 = scmp.ne.s32.totalorder %s172, %s175
      %p181 = scmp.eq.s32.totalorder %s22, 0
      %p182 = por %p180, %p181
      %p183 = scmp.ne.s32.totalorder %s172, %s175
      %p184 = scmp.eq.s32.totalorder %s27, 3
      %p185 = por %p183, %p184
      %p186 = scmp.ne.s32.totalorder %s175, %s176
      %p187 = scmp.eq.s32.totalorder %s27, 0
      %p188 = por %p186, %p187
      %p189 = scmp.ne.s32.totalorder %s175, %s176
      %p190 = scmp.eq.s32.totalorder %s28, 3
      %p191 = por %p189, %p190
      %p193 = scmp.ne.s32.totalorder %s176, %s192
      %p194 = scmp.eq.s32.totalorder %s28, 0
      %p195 = por %p193, %p194
      %p196 = scmp.le.s32.totalorder 1, %s22
      %p197 = scmp.lt.s32.totalorder %s22, 5
      %p198 = pnand %p196, %p197
      %p199 = pneg %p198
      // Predicated region
      $region9: #{tpu_custom_call.1} parent=5 // pred_check
        _
      $region10: #{tpu_custom_call.1} parent=5 // pred_check_branch
        %201 = sbr.rel (%p198) target = $region12
      $region11: #{tpu_custom_call.1} parent=5 // pred_region
        %s202 = ssub.s32 %s22, 1
        // Predicated region
        $region13: #{tpu_custom_call.1} parent=11 // pred_check
          %p203 = pneg %p83
        $region14: #{tpu_custom_call.1} parent=11 // pred_check_branch
          %205 = sbr.rel (%p203) target = $region16
        $region15: #{tpu_custom_call.1} parent=11 // pred_region
          %s207 = ssub.s32 6144, 6144
          %208 = vsyncadd [#allocation6], %s207
          %s209 = sshll.u32 [#allocation5], 4
          %s210 = int_to_ptr.vmem [resolvable:$true] %s209
          %215 = dma.hbm_to_vmem [thread:$0]  %s1, 6144, %s210, [#allocation6], 384, 384, 24
        $region16: #{tpu_custom_call.1} parent=11 // pred_fallthru
          _
        // Predicated region
        $region17: #{tpu_custom_call.1} parent=11 // pred_check
          %p216 = pneg %p104
        $region18: #{tpu_custom_call.1} parent=11 // pred_check_branch
          %218 = sbr.rel (%p216) target = $region20
        $region19: #{tpu_custom_call.1} parent=11 // pred_region
          %s220 = ssub.s32 48, 48
          %221 = vsyncadd [#allocation6], %s220
          %s223 = sshll.u32 [#allocation7], 4
          %s224 = int_to_ptr.vmem [resolvable:$true] %s223
          %226 = dma.hbm_to_vmem [thread:$0]  %s2, 48, %s224, [#allocation6]
        $region20: #{tpu_custom_call.1} parent=11 // pred_fallthru
          _
      $region12: #{tpu_custom_call.1} parent=5 // pred_fallthru
        _
      %p227 = scmp.lt.s32.totalorder %s22, 4
      // Predicated region
      $region21: #{tpu_custom_call.1} parent=5 // pred_check
        %p228 = pneg %p227
      $region22: #{tpu_custom_call.1} parent=5 // pred_check_branch
        %230 = sbr.rel (%p228) target = $region24
      $region23: #{tpu_custom_call.1} parent=5 // pred_region
        // Predicated region
        $region25: #{tpu_custom_call.1} parent=23 // pred_check
          %p231 = pneg %p56
        $region26: #{tpu_custom_call.1} parent=23 // pred_check_branch
          %233 = sbr.rel (%p231) target = $region28
        $region27: #{tpu_custom_call.1} parent=23 // pred_region
          %s234 = sand.u32 %s46, 1
          %s235 = scalar_lea.sflag [#allocation3], %s234
          %s236 = sand.u32 %s46, 1
          %s237 = smul.addr %s236, 32
          %s238 = scalar_lea.vmem [#allocation2], %s237
          %s239 = smul.u32 4, %s30
          %s241 = ssub.s32 512, 512
          %242 = vsyncadd %s235, %s241
          %s243 = smul.addr %s29, 8
          %s244 = sadd.s32 %s239, %s243
          %s245 = smul.addr %s244, 128
          %s246 = scalar_lea.hbm %s0, %s245
          %s247 = sshll.u32 %s238, 4
          %s248 = int_to_ptr.vmem [resolvable:$true] %s247
          %253 = dma.hbm_to_vmem [thread:$0]  %s246, 512, %s248, %s235, 128, 128, 8
        $region28: #{tpu_custom_call.1} parent=23 // pred_fallthru
          _
      $region24: #{tpu_custom_call.1} parent=5 // pred_fallthru
        _
      %p254 = scmp.le.s32.totalorder 1, %s22
      %p255 = scmp.lt.s32.totalorder %s22, 5
      %p256 = pnand %p254, %p255
      %p257 = pneg %p256
      // Predicated region
      $region29: #{tpu_custom_call.1} parent=5 // pred_check
        _
      $region30: #{tpu_custom_call.1} parent=5 // pred_check_branch
        %259 = sbr.rel (%p256) target = $region32
      $region31: #{tpu_custom_call.1} parent=5 // pred_region
        %s260 = ssub.s32 %s22, 1
        %s261 = sand.u32 %s49, 1
        %s262 = scalar_lea.sflag [#allocation3], %s261
        %s263 = sand.u32 %s49, 1
        %s264 = smul.addr %s263, 32
        %s265 = scalar_lea.vmem [#allocation2], %s264
        // Predicated region
        $region33: #{tpu_custom_call.1} parent=31 // pred_check
          %p266 = pneg %p62
        $region34: #{tpu_custom_call.1} parent=31 // pred_check_branch
          %268 = sbr.rel (%p266) target = $region36
        $region35: #{tpu_custom_call.1} parent=31 // pred_region
          %269 = dma.done %s262, 512
        $region36: #{tpu_custom_call.1} parent=31 // pred_fallthru
          _
        // Predicated region
        $region37: #{tpu_custom_call.1} parent=31 // pred_check
          %p270 = pneg %p83
        $region38: #{tpu_custom_call.1} parent=31 // pred_check_branch
          %272 = sbr.rel (%p270) target = $region40
        $region39: #{tpu_custom_call.1} parent=31 // pred_region
          %273 = dma.done [#allocation6], 6144
        $region40: #{tpu_custom_call.1} parent=31 // pred_fallthru
          _
        // Predicated region
        $region41: #{tpu_custom_call.1} parent=31 // pred_check
          %p274 = pneg %p104
        $region42: #{tpu_custom_call.1} parent=31 // pred_check_branch
          %276 = sbr.rel (%p274) target = $region44
        $region43: #{tpu_custom_call.1} parent=31 // pred_region
          %277 = dma.done [#allocation6], 48
        $region44: #{tpu_custom_call.1} parent=31 // pred_fallthru
          _
        %s278 = sand.u32 %s49, 1
        %s279 = scalar_lea.sflag [#allocation3], %s278
        %s280 = sand.u32 %s49, 1
        %s281 = smul.addr %s280, 32
        %s282 = scalar_lea.vmem [#allocation2], %s281
        %p283 = pneg %p62
        %p284 = pneg %p59
        %p285 = pneg %p83
        %p286 = pneg %p80
        %p287 = pneg %p104
        %p288 = pneg %p101
        %p289 = pneg %p132
        %p290 = pneg %p129
        %s291 = sand.u32 %s119, 1
        %s292 = scalar_lea.sflag [#allocation4], %s291
        %s293 = sand.u32 %s119, 1
        %s294 = smul.addr %s293, 32
        %s295 = scalar_lea.vmem [#allocation8], %s294
        %p296 = pneg %p160
        %p297 = pneg %p157
        %s298 = sand.u32 %s27, 1
        %s299 = scalar_lea.sflag [#allocation10], %s298
        %s300 = sand.u32 %s147, 1
        %s301 = smul.addr %s300, 32
        %s302 = scalar_lea.vmem [#allocation9], %s301
        %p303 = pneg %p188
        %p304 = pneg %p185
        %s305 = sand.u32 %s27, 1
        %s306 = scalar_lea.sflag [#allocation10], %s305
        %s307 = sand.u32 %s175, 1
        %s308 = smul.addr %s307, 32
        %s309 = scalar_lea.vmem [#allocation11], %s308
        %s310 = smul.u32 4, %s32
        %s311 = smul.u32 4, %s32
        %s312 = smul.u32 4, %s32
        %s313 = smul.u32 4, %s32
        %v314 = vld [vmem:[%s265] sm:$0xff]
        %v315 = vld [vmem:[%s265 + $0x8] sm:$0xff]
        %v316 = vld [vmem:[%s265 + $0x10] sm:$0xff]
        %v317 = vld [vmem:[%s265 + $0x18] sm:$0xff]
        %318 = vadd.xlane.f32.xlu0 %v314
        %v319 = vpop.xlane.xlu0 %318
        %320 = vadd.xlane.f32.xlu0 %v315
        %v321 = vpop.xlane.xlu0 %320
        %322 = vadd.xlane.f32.xlu0 %v316
        %v323 = vpop.xlane.xlu0 %322
        %324 = vadd.xlane.f32.xlu0 %v317
        %v325 = vpop.xlane.xlu0 %324
        %v326 = vrcp.pop 128.0
        %v327 = vmul.f32 %v319, %v326
        %v328 = vmul.f32 %v321, %v326
        %v329 = vmul.f32 %v323, %v326
        %v330 = vmul.f32 %v325, %v326
        %v331 = vsub.f32 %v314, %v327
        %v332 = vsub.f32 %v315, %v328
        %v333 = vsub.f32 %v316, %v329
        %v334 = vsub.f32 %v317, %v330
        %v335 = vmul.f32 %v331, %v331
        %v336 = vmul.f32 %v332, %v332
        %v337 = vmul.f32 %v333, %v333
        %v338 = vmul.f32 %v334, %v334
        %339 = vadd.xlane.f32.xlu0 %v335
        %v340 = vpop.xlane.xlu0 %339
        %341 = vadd.xlane.f32.xlu0 %v336
        %v342 = vpop.xlane.xlu0 %341
        %343 = vadd.xlane.f32.xlu0 %v337
        %v344 = vpop.xlane.xlu0 %343
        %345 = vadd.xlane.f32.xlu0 %v338
        %v346 = vpop.xlane.xlu0 %345
        %v347 = vmul.f32 %v340, %v326
        %v348 = vmul.f32 %v342, %v326
        %v349 = vmul.f32 %v344, %v326
        %v350 = vmul.f32 %v346, %v326
        %v351 = vadd.f32 %v347, 1e-06
        %v352 = vadd.f32 %v348, 1e-06
        %v353 = vadd.f32 %v349, 1e-06
        %v354 = vadd.f32 %v350, 1e-06
        %v355 = vrsqrt.pop %v351
        %v356 = vrsqrt.pop %v352
        %v357 = vrsqrt.pop %v353
        %v358 = vrsqrt.pop %v354
        %v359 = vmul.f32 %v331, %v355
        %v360 = vmul.f32 %v332, %v356
        %v361 = vmul.f32 %v333, %v357
        %v362 = vmul.f32 %v334, %v358
        %v363 = vld [vmem:[#allocation5] sm:$0xff]
        %v364 = vld [vmem:[#allocation5 + $0x8] sm:$0xff]
        %v365 = vld [vmem:[#allocation5 + $0x10] sm:$0xff]
        %v366 = vld [vmem:[#allocation5 + $0x18] sm:$0xff]
        %v367 = vld [vmem:[#allocation5 + $0x20] sm:$0xff]
        %v368 = vld [vmem:[#allocation5 + $0x28] sm:$0xff]
        %v369 = vld [vmem:[#allocation5 + $0x30] sm:$0xff]
        %v370 = vld [vmem:[#allocation5 + $0x38] sm:$0xff]
        %v371 = vld [vmem:[#allocation5 + $0x40] sm:$0xff]
        %v372 = vld [vmem:[#allocation5 + $0x48] sm:$0xff]
        %v373 = vld [vmem:[#allocation5 + $0x50] sm:$0xff]
        %v374 = vld [vmem:[#allocation5 + $0x58] sm:$0xff]
        %v375 = vld [vmem:[#allocation5 + $0x60] sm:$0xff]
        %v376 = vld [vmem:[#allocation5 + $0x68] sm:$0xff]
        %v377 = vld [vmem:[#allocation5 + $0x70] sm:$0xff]
        %v378 = vld [vmem:[#allocation5 + $0x78] sm:$0xff]
        %v379 = vld [vmem:[#allocation5 + $0x80] sm:$0xff]
        %v380 = vld [vmem:[#allocation5 + $0x88] sm:$0xff]
        %v381 = vld [vmem:[#allocation5 + $0x90] sm:$0xff]
        %v382 = vld [vmem:[#allocation5 + $0x98] sm:$0xff]
        %v383 = vld [vmem:[#allocation5 + $0xa0] sm:$0xff]
        %v384 = vld [vmem:[#allocation5 + $0xa8] sm:$0xff]
        %v385 = vld [vmem:[#allocation5 + $0xb0] sm:$0xff]
        %v386 = vld [vmem:[#allocation5 + $0xb8] sm:$0xff]
        %v387 = vld [vmem:[#allocation5 + $0xc0] sm:$0xff]
        %v388 = vld [vmem:[#allocation5 + $0xc8] sm:$0xff]
        %v389 = vld [vmem:[#allocation5 + $0xd0] sm:$0xff]
        %v390 = vld [vmem:[#allocation5 + $0xd8] sm:$0xff]
        %v391 = vld [vmem:[#allocation5 + $0xe0] sm:$0xff]
        %v392 = vld [vmem:[#allocation5 + $0xe8] sm:$0xff]
        %v393 = vld [vmem:[#allocation5 + $0xf0] sm:$0xff]
        %v394 = vld [vmem:[#allocation5 + $0xf8] sm:$0xff]
        %v395 = vld [vmem:[#allocation5 + $0x100] sm:$0xff]
        %v396 = vld [vmem:[#allocation5 + $0x108] sm:$0xff]
        %v397 = vld [vmem:[#allocation5 + $0x110] sm:$0xff]
        %v398 = vld [vmem:[#allocation5 + $0x118] sm:$0xff]
        %v399 = vld [vmem:[#allocation5 + $0x120] sm:$0xff]
        %v400 = vld [vmem:[#allocation5 + $0x128] sm:$0xff]
        %v401 = vld [vmem:[#allocation5 + $0x130] sm:$0xff]
        %v402 = vld [vmem:[#allocation5 + $0x138] sm:$0xff]
        %v403 = vld [vmem:[#allocation5 + $0x140] sm:$0xff]
        %v404 = vld [vmem:[#allocation5 + $0x148] sm:$0xff]
        %v405 = vld [vmem:[#allocation5 + $0x150] sm:$0xff]
        %v406 = vld [vmem:[#allocation5 + $0x158] sm:$0xff]
        %v407 = vld [vmem:[#allocation5 + $0x160] sm:$0xff]
        %v408 = vld [vmem:[#allocation5 + $0x168] sm:$0xff]
        %v409 = vld [vmem:[#allocation5 + $0x170] sm:$0xff]
        %v410 = vld [vmem:[#allocation5 + $0x178] sm:$0xff]
        %v411 = vld [vmem:[#allocation7] sm:$0x7]
        %v413 = vlaneseq
        %v414 = vshrl.u32 %v413, 7
        %v415 = vsub.s32 0, %v414
        %v416 = vrot.slane %v411, %v415
        %v417 = vlaneseq
        %v418 = vshrl.u32 %v417, 7
        %v419 = vsub.s32 1, %v418
        %v420 = vrot.slane %v411, %v419
        %v421 = vlaneseq
        %v422 = vshrl.u32 %v421, 7
        %v423 = vsub.s32 2, %v422
        %v424 = vrot.slane %v411, %v423
        %428 = vmatprep.subr.mxu0 %v364
        %429 = vmatpush1.msra.mxu0 %v363
        %430 = vmatprep.subr.mxu0 %v367
        %431 = vmatpush1.msra.mxu0 %v366
        %432 = vmatprep.subr.mxu0 %v370
        %433 = vmatpush1.msra.mxu0 %v369
        %434 = vmatprep.subr.mxu0 %v373
        %435 = vmatpush1.msra.mxu0 %v372
        %436 = vmatprep.subr.mxu0 %v376
        %437 = vmatpush1.msra.mxu0 %v375
        %438 = vmatprep.subr.mxu0 %v379
        %439 = vmatpush1.msra.mxu0 %v378
        %440 = vmatprep.subr.mxu0 %v382
        %441 = vmatpush1.msra.mxu0 %v381
        %442 = vmatprep.subr.mxu0 %v385
        %443 = vmatpush1.msra.mxu0 %v384
        %444 = vmatprep.subr.mxu0 %v388
        %445 = vmatpush1.msra.mxu0 %v387
        %446 = vmatprep.subr.mxu0 %v391
        %447 = vmatpush1.msra.mxu0 %v390
        %448 = vmatprep.subr.mxu0 %v394
        %449 = vmatpush1.msra.mxu0 %v393
        %450 = vmatprep.subr.mxu0 %v397
        %451 = vmatpush1.msra.mxu0 %v396
        %452 = vmatprep.subr.mxu0 %v400
        %453 = vmatpush1.msra.mxu0 %v399
        %454 = vmatprep.subr.mxu0 %v403
        %455 = vmatpush1.msra.mxu0 %v402
        %456 = vmatprep.subr.mxu0 %v406
        %457 = vmatpush1.msra.mxu0 %v405
        %458 = vmatprep.subr.mxu0 %v409
        %459 = vmatpush1.msra.mxu0 %v408
        %460 = vmatprep.subr.mxu0 0.0
        %461 = vmatpush1.msra.mxu0 0.0
        %462 = vmatprep.subr.mxu0 0.0
        %463 = vmatpush1.msra.mxu0 0.0
        %464 = vmatprep.subr.mxu0 0.0
        %465 = vmatpush1.msra.mxu0 0.0
        %466 = vmatprep.subr.mxu0 0.0
        %467 = vmatpush1.msra.mxu0 0.0
        %468 = vmatprep.subr.mxu0 0.0
        %469 = vmatpush1.msra.mxu0 0.0
        %470 = vmatprep.subr.mxu0 0.0
        %471 = vmatpush1.msra.mxu0 0.0
        %472 = vmatprep.subr.mxu0 0.0
        %473 = vmatpush1.msra.mxu0 0.0
        %474 = vmatprep.subr.mxu0 0.0
        %475 = vmatpush1.msra.mxu0 0.0
        %476 = vmatprep.subr.mxu0 0.0
        %477 = vmatpush1.msra.mxu0 0.0
        %478 = vmatprep.subr.mxu0 0.0
        %479 = vmatpush1.msra.mxu0 0.0
        %480 = vmatprep.subr.mxu0 0.0
        %481 = vmatpush1.msra.mxu0 0.0
        %482 = vmatprep.subr.mxu0 0.0
        %483 = vmatpush1.msra.mxu0 0.0
        %484 = vmatprep.subr.mxu0 0.0
        %485 = vmatpush1.msra.mxu0 0.0
        %486 = vmatprep.subr.mxu0 0.0
        %487 = vmatpush1.msra.mxu0 0.0
        %488 = vmatprep.subr.mxu0 0.0
        %489 = vmatpush1.msra.mxu0 0.0
        %490 = vmatprep.subr.mxu0 0.0
        %491 = vmatpush1.msra.mxu0 0.0
        %492 = vmatprep.mubr.f32.mxu0 0.0
        %493 = vmatmul.mubr.f32.gmra.mrb[0].mxu0 %v359
        %v494 = vpop.f32.mrb[0].mxu0
        %v495 = vadd.f32 %v416, %v494
        %v496 = vpop.f32.mrb[0].mxu0
        %v497 = vadd.f32 %v420, %v496
        %498 = vmatprep.mubr.f32.mxu0 0.0
        %499 = vmatmul.mubr.f32.gmra.mrb[0].mxu0 %v360
        %v500 = vpop.f32.mrb[0].mxu0
        %v501 = vadd.f32 %v416, %v500
        %v502 = vpop.f32.mrb[0].mxu0
        %v503 = vadd.f32 %v420, %v502
        %504 = vmatprep.mubr.f32.mxu0 0.0
        %505 = vmatmul.mubr.f32.gmra.mrb[0].mxu0 %v361
        %v506 = vpop.f32.mrb[0].mxu0
        %v507 = vadd.f32 %v416, %v506
        %v508 = vpop.f32.mrb[0].mxu0
        %v509 = vadd.f32 %v420, %v508
        %510 = vmatprep.mubr.f32.mxu0 0.0
        %511 = vmatmul.mubr.f32.gmra.mrb[0].mxu0 %v362
        %v512 = vpop.f32.mrb[0].mxu0
        %v513 = vadd.f32 %v416, %v512
        %v514 = vpop.f32.mrb[0].mxu0
        %v515 = vadd.f32 %v420, %v514
        %516 = vdwg.mxu0
        %517 = vmatprep.subr.mxu0 0.0
        %518 = vmatpush1.msra.mxu0 %v365
        %519 = vmatprep.subr.mxu0 0.0
        %520 = vmatpush1.msra.mxu0 %v368
        %521 = vmatprep.subr.mxu0 0.0
        %522 = vmatpush1.msra.mxu0 %v371
        %523 = vmatprep.subr.mxu0 0.0
        %524 = vmatpush1.msra.mxu0 %v374
        %525 = vmatprep.subr.mxu0 0.0
        %526 = vmatpush1.msra.mxu0 %v377
        %527 = vmatprep.subr.mxu0 0.0
        %528 = vmatpush1.msra.mxu0 %v380
        %529 = vmatprep.subr.mxu0 0.0
        %530 = vmatpush1.msra.mxu0 %v383
        %531 = vmatprep.subr.mxu0 0.0
        %532 = vmatpush1.msra.mxu0 %v386
        %533 = vmatprep.subr.mxu0 0.0
        %534 = vmatpush1.msra.mxu0 %v389
        %535 = vmatprep.subr.mxu0 0.0
        %536 = vmatpush1.msra.mxu0 %v392
        %537 = vmatprep.subr.mxu0 0.0
        %538 = vmatpush1.msra.mxu0 %v395
        %539 = vmatprep.subr.mxu0 0.0
        %540 = vmatpush1.msra.mxu0 %v398
        %541 = vmatprep.subr.mxu0 0.0
        %542 = vmatpush1.msra.mxu0 %v401
        %543 = vmatprep.subr.mxu0 0.0
        %544 = vmatpush1.msra.mxu0 %v404
        %545 = vmatprep.subr.mxu0 0.0
        %546 = vmatpush1.msra.mxu0 %v407
        %547 = vmatprep.subr.mxu0 0.0
        %548 = vmatpush1.msra.mxu0 %v410
        %549 = vmatprep.subr.mxu0 0.0
        %550 = vmatpush1.msra.mxu0 0.0
        %551 = vmatprep.subr.mxu0 0.0
        %552 = vmatpush1.msra.mxu0 0.0
        %553 = vmatprep.subr.mxu0 0.0
        %554 = vmatpush1.msra.mxu0 0.0
        %555 = vmatprep.subr.mxu0 0.0
        %556 = vmatpush1.msra.mxu0 0.0
        %557 = vmatprep.subr.mxu0 0.0
        %558 = vmatpush1.msra.mxu0 0.0
        %559 = vmatprep.subr.mxu0 0.0
        %560 = vmatpush1.msra.mxu0 0.0
        %561 = vmatprep.subr.mxu0 0.0
        %562 = vmatpush1.msra.mxu0 0.0
        %563 = vmatprep.subr.mxu0 0.0
        %564 = vmatpush1.msra.mxu0 0.0
        %565 = vmatprep.subr.mxu0 0.0
        %566 = vmatpush1.msra.mxu0 0.0
        %567 = vmatprep.subr.mxu0 0.0
        %568 = vmatpush1.msra.mxu0 0.0
        %569 = vmatprep.subr.mxu0 0.0
        %570 = vmatpush1.msra.mxu0 0.0
        %571 = vmatprep.subr.mxu0 0.0
        %572 = vmatpush1.msra.mxu0 0.0
        %573 = vmatprep.subr.mxu0 0.0
        %574 = vmatpush1.msra.mxu0 0.0
        %575 = vmatprep.subr.mxu0 0.0
        %576 = vmatpush1.msra.mxu0 0.0
        %577 = vmatprep.subr.mxu0 0.0
        %578 = vmatpush1.msra.mxu0 0.0
        %579 = vmatprep.subr.mxu0 0.0
        %580 = vmatpush1.msra.mxu0 0.0
        %581 = vmatprep.mubr.f32.mxu0 0.0
        %582 = vmatmul.mubr.f32.gmra.mrb[0].mxu0 %v359
        %v583 = vpop.f32.mrb[0].mxu0
        %v584 = vadd.f32 %v424, %v583
        %v585 = vpop.f32.mrb[0].mxu0
        %586 = vmatprep.mubr.f32.mxu0 0.0
        %587 = vmatmul.mubr.f32.gmra.mrb[0].mxu0 %v360
        %v588 = vpop.f32.mrb[0].mxu0
        %v589 = vadd.f32 %v424, %v588
        %v590 = vpop.f32.mrb[0].mxu0
        %591 = vmatprep.mubr.f32.mxu0 0.0
        %592 = vmatmul.mubr.f32.gmra.mrb[0].mxu0 %v361
        %v593 = vpop.f32.mrb[0].mxu0
        %v594 = vadd.f32 %v424, %v593
        %v595 = vpop.f32.mrb[0].mxu0
        %596 = vmatprep.mubr.f32.mxu0 0.0
        %597 = vmatmul.mubr.f32.gmra.mrb[0].mxu0 %v362
        %v598 = vpop.f32.mrb[0].mxu0
        %v599 = vadd.f32 %v424, %v598
        %v600 = vpop.f32.mrb[0].mxu0
        %601 = vdwg.mxu0
        %602 = vst [vmem:[%s295] sm:$0xff] %v495
        %603 = vst [vmem:[%s295 + $0x8] sm:$0xff] %v501
        %604 = vst [vmem:[%s295 + $0x10] sm:$0xff] %v507
        %605 = vst [vmem:[%s295 + $0x18] sm:$0xff] %v513
        %606 = vst [vmem:[%s302] sm:$0xff] %v497
        %607 = vst [vmem:[%s302 + $0x8] sm:$0xff] %v503
        %608 = vst [vmem:[%s302 + $0x10] sm:$0xff] %v509
        %609 = vst [vmem:[%s302 + $0x18] sm:$0xff] %v515
        %610 = vst [vmem:[%s309] sm:$0xff] %v584
        %611 = vst [vmem:[%s309 + $0x8] sm:$0xff] %v589
        %612 = vst [vmem:[%s309 + $0x10] sm:$0xff] %v594
        %613 = vst [vmem:[%s309 + $0x18] sm:$0xff] %v599
        %s614 = sand.u32 %s119, 1
        %s615 = scalar_lea.sflag [#allocation4], %s614
        %s616 = sand.u32 %s119, 1
        %s617 = smul.addr %s616, 32
        %s618 = scalar_lea.vmem [#allocation8], %s617
        %s619 = sand.u32 %s27, 1
        %s620 = scalar_lea.sflag [#allocation10], %s619
        %s621 = sand.u32 %s147, 1
        %s622 = smul.addr %s621, 32
        %s623 = scalar_lea.vmem [#allocation9], %s622
        %s624 = sand.u32 %s27, 1
        %s625 = scalar_lea.sflag [#allocation10], %s624
        %s626 = sand.u32 %s175, 1
        %s627 = smul.addr %s626, 32
        %s628 = scalar_lea.vmem [#allocation11], %s627
        // Predicated region
        $region45: #{tpu_custom_call.1} parent=31 // pred_check
          %p629 = pneg %p129
        $region46: #{tpu_custom_call.1} parent=31 // pred_check_branch
          %631 = sbr.rel (%p629) target = $region48
        $region47: #{tpu_custom_call.1} parent=31 // pred_region
          %s632 = smul.u32 4, %s32
          %s634 = ssub.s32 512, 512
          %635 = vsyncadd %s615, %s634
          %s636 = smul.addr %s31, 8
          %s637 = sadd.s32 %s632, %s636
          %s638 = smul.addr %s637, 128
          %s639 = scalar_lea.hbm %s3, %s638
          %s640 = sshll.u32 %s618, 4
          %s641 = int_to_ptr.vmem [resolvable:$true] %s640
          %646 = dma.vmem_to_hbm [thread:$0]  %s641, 512, %s639, %s615, 128, 128, 8
        $region48: #{tpu_custom_call.1} parent=31 // pred_fallthru
          _
        // Predicated region
        $region49: #{tpu_custom_call.1} parent=31 // pred_check
          %p647 = pneg %p157
        $region50: #{tpu_custom_call.1} parent=31 // pred_check_branch
          %649 = sbr.rel (%p647) target = $region52
        $region51: #{tpu_custom_call.1} parent=31 // pred_region
          %s650 = smul.u32 4, %s32
          %s652 = ssub.s32 512, 512
          %653 = vsyncadd %s620, %s652
          %s654 = smul.addr %s31, 8
          %s655 = sadd.s32 %s650, %s654
          %s656 = smul.addr %s655, 128
          %s657 = scalar_lea.hbm %s4, %s656
          %s658 = sshll.u32 %s623, 4
          %s659 = int_to_ptr.vmem [resolvable:$true] %s658
          %664 = dma.vmem_to_hbm [thread:$0]  %s659, 512, %s657, %s620, 128, 128, 8
        $region52: #{tpu_custom_call.1} parent=31 // pred_fallthru
          _
        // Predicated region
        $region53: #{tpu_custom_call.1} parent=31 // pred_check
          %p665 = pneg %p185
        $region54: #{tpu_custom_call.1} parent=31 // pred_check_branch
          %667 = sbr.rel (%p665) target = $region56
        $region55: #{tpu_custom_call.1} parent=31 // pred_region
          %s668 = smul.u32 4, %s32
          %s670 = ssub.s32 512, 512
          %671 = vsyncadd %s625, %s670
          %s672 = smul.addr %s31, 8
          %s673 = sadd.s32 %s668, %s672
          %s674 = smul.addr %s673, 128
          %s675 = scalar_lea.hbm %s5, %s674
          %s676 = sshll.u32 %s628, 4
          %s677 = int_to_ptr.vmem [resolvable:$true] %s676
          %682 = dma.vmem_to_hbm [thread:$0]  %s677, 512, %s675, %s625, 128, 128, 8
        $region56: #{tpu_custom_call.1} parent=31 // pred_fallthru
          _
      $region32: #{tpu_custom_call.1} parent=5 // pred_fallthru
        _
      %p683 = scmp.le.s32.totalorder 2, %s22
      // Predicated region
      $region57: #{tpu_custom_call.1} parent=5 // pred_check
        %p684 = pneg %p683
      $region58: #{tpu_custom_call.1} parent=5 // pred_check_branch
        %686 = sbr.rel (%p684) target = $region60
      $region59: #{tpu_custom_call.1} parent=5 // pred_region
        %s687 = ssub.s32 %s22, 2
        // Predicated region
        $region61: #{tpu_custom_call.1} parent=59 // pred_check
          %p688 = pneg %p135
        $region62: #{tpu_custom_call.1} parent=59 // pred_check_branch
          %690 = sbr.rel (%p688) target = $region64
        $region63: #{tpu_custom_call.1} parent=59 // pred_region
          %s691 = sand.u32 %s120, 1
          %s692 = scalar_lea.sflag [#allocation4], %s691
          %s693 = sand.u32 %s120, 1
          %s694 = smul.addr %s693, 32
          %s695 = scalar_lea.vmem [#allocation8], %s694
          %696 = dma.done %s692, 512
        $region64: #{tpu_custom_call.1} parent=59 // pred_fallthru
          _
        // Predicated region
        $region65: #{tpu_custom_call.1} parent=59 // pred_check
          %p697 = pneg %p163
        $region66: #{tpu_custom_call.1} parent=59 // pred_check_branch
          %699 = sbr.rel (%p697) target = $region68
        $region67: #{tpu_custom_call.1} parent=59 // pred_region
          %s700 = sand.u32 %s28, 1
          %s701 = scalar_lea.sflag [#allocation10], %s700
          %s702 = sand.u32 %s148, 1
          %s703 = smul.addr %s702, 32
          %s704 = scalar_lea.vmem [#allocation9], %s703
          %705 = dma.done %s701, 512
        $region68: #{tpu_custom_call.1} parent=59 // pred_fallthru
          _
        // Predicated region
        $region69: #{tpu_custom_call.1} parent=59 // pred_check
          %p706 = pneg %p191
        $region70: #{tpu_custom_call.1} parent=59 // pred_check_branch
          %708 = sbr.rel (%p706) target = $region72
        $region71: #{tpu_custom_call.1} parent=59 // pred_region
          %s709 = sand.u32 %s28, 1
          %s710 = scalar_lea.sflag [#allocation10], %s709
          %s711 = sand.u32 %s176, 1
          %s712 = smul.addr %s711, 32
          %s713 = scalar_lea.vmem [#allocation11], %s712
          %714 = dma.done %s710, 512
        $region72: #{tpu_custom_call.1} parent=59 // pred_fallthru
          _
      $region60: #{tpu_custom_call.1} parent=5 // pred_fallthru
        _
    $region6: #{tpu_custom_call.1} parent=1 // loop_footer
      %s26 = sadd.s32 1, %s22
    $region7: #{tpu_custom_call.1} parent=1 // loop_footer_branch
      %21 = sbr.rel target = $region3
    $region8: #{tpu_custom_call.1} parent=1 // loop_exit
      _
    %715 = vsyncpa [#allocation3], 1
    %s716 = scalar_lea.sflag [#allocation3], 1
    %717 = vsyncpa %s716, 1
    %718 = vsyncpa [#allocation6], 1
    %719 = vsyncpa [#allocation4], 1
    %s720 = scalar_lea.sflag [#allocation4], 1
    %721 = vsyncpa %s720, 1
    %722 = vsyncpa [#allocation10], 1
    %s723 = scalar_lea.sflag [#allocation10], 1
    %724 = vsyncpa %s723, 1

</llo_original>
